<compile_context>
chip_gen: v5e
topology: v5e:2x2
jax: 0.10.0
libtpu: 0.0.40
codegen_flags: <defaults>
</compile_context>

<pallas_src>
import functools

import jax
import jax.numpy as jnp
from jax import lax
from jax.experimental import pallas as pl
from jax.experimental.pallas import tpu as pltpu


def _round_up(x, m):
    return (x + m - 1) // m * m


def _ds_kernel(x_ref, wd_ref, wp_ref, bp_ref, o_ref, *, stride, kh, kw, th, wo):
    # x_ref : (rows_in, W_pad, Cin_p)   input slab incl. halo rows (one H-tile)
    # wd_ref: (kh, kw, Cin_p)           depthwise weights (f32)
    # wp_ref: (Cin_p, Cout_p)           pointwise weights (bf16)
    # bp_ref: (1, Cout_p)               fused bias  bd @ wp + bp  (f32)
    # o_ref : (th, wo, Cout_p)
    x = x_ref[...]
    if x.dtype != jnp.float32:
        x = x.astype(jnp.float32)       # depthwise math on the VPU in f32
    cin = x.shape[-1]

    def tap(i, j):
        if stride == 1:
            return x[i:i + th, j:j + wo, :]
        # TODO(synk): for stride > 1 move the striding into the HBM-side gather
        # (strided DMA) instead of an in-VMEM strided slice per tap.
        return lax.slice(
            x, (i, j, 0),
            (i + stride * (th - 1) + 1, j + stride * (wo - 1) + 1, cin),
            (stride, stride, 1))

    # Depthwise convolution: unrolled taps, first tap initialises the acc.
    acc = tap(0, 0) * wd_ref[0, 0, :]
    for i in range(kh):
        for j in range(kw):
            if i == 0 and j == 0:
                continue
            acc = acc + tap(i, j) * wd_ref[i, j, :]

    # Pointwise 1x1 conv == channel matmul on the MXU (bf16 operands, f32 acc).
    # With wo a multiple of 8 the (th, wo, C) -> (th*wo, C) flatten is
    # layout-preserving (last/lane dim untouched).
    dw = acc.astype(jnp.bfloat16).reshape(th * wo, cin)
    out = jnp.dot(dw, wp_ref[...], preferred_element_type=jnp.float32)
    out = out + bp_ref[...]
    o_ref[...] = out.reshape(th, wo, -1).astype(o_ref.dtype)


def depthwise_separable(x_nchw, w_depth, b_depth, w_point, b_point,
                        *, stride=1, padding=0, tile_h=None):
    """Forward of DepthwiseSeparable.

    x_nchw : (N, Cin, H, W)                      -- PyTorch layout
    w_depth: (Cin, 1, kH, kW)   b_depth: (Cin,)  -- nn.Conv2d(groups=Cin)
    w_point: (Cout, Cin, 1, 1)  b_point: (Cout,) -- nn.Conv2d 1x1
    returns: (N, Cout, Ho, Wo)
    """
    n, cin, h, w = x_nchw.shape
    kh, kw = int(w_depth.shape[2]), int(w_depth.shape[3])
    cout = int(w_point.shape[0])

    ho = (h + 2 * padding - kh) // stride + 1
    wo = (w + 2 * padding - kw) // stride + 1

    lane = 128
    cin_p = _round_up(cin, lane)
    cout_p = _round_up(cout, lane)

    # --- wrapper layout prep: NCHW -> NHWC, spatial pad, lane-pad channels ---
    x = jnp.transpose(x_nchw, (0, 2, 3, 1))
    x = jnp.pad(x, ((0, 0), (padding, padding), (padding, padding),
                    (0, cin_p - cin)))
    w_pad = x.shape[2]

    # --- parameters: pre-cast, lane-pad, fuse depthwise bias into pointwise ---
    wd = jnp.transpose(w_depth[:, 0, :, :], (1, 2, 0)).astype(jnp.float32)
    wd = jnp.pad(wd, ((0, 0), (0, 0), (0, cin_p - cin)))            # (kh,kw,Cin_p)

    wp_f32 = jnp.transpose(w_point[:, :, 0, 0], (1, 0)).astype(jnp.float32)
    bp_fused = b_point.astype(jnp.float32) + b_depth.astype(jnp.float32) @ wp_f32
    wp = jnp.pad(wp_f32, ((0, cin_p - cin), (0, cout_p - cout))
                 ).astype(jnp.bfloat16)                             # (Cin_p,Cout_p)
    bp = jnp.pad(bp_fused, (0, cout_p - cout)).reshape(1, cout_p)   # (1,Cout_p)

    # --- spatial (H) tiling: pick TH dividing Ho so tiles fit a VMEM budget ---
    itemsize = x.dtype.itemsize
    budget = 2 << 20            # target bytes for one (input + output) tile pair
    if tile_h is not None and ho % tile_h == 0:
        th = int(tile_h)
    else:
        cap = int(tile_h) if tile_h is not None else ho
        th = 1
        for cand in range(1, ho + 1):
            if ho % cand or cand > cap:
                continue
            rows = (cand - 1) * stride + kh
            tile_bytes = (rows * w_pad * cin_p + cand * wo * cout_p) * itemsize
            if tile_bytes <= budget:
                th = cand
    rows_in = (th - 1) * stride + kh
    n_tiles = ho // th

    # Pre-gather per-tile input slabs (halo rows duplicated) so every operand
    # uses plain Blocked BlockSpecs and stays fully auto-pipelined.
    x_tiles = jnp.stack(
        [lax.slice_in_dim(x, t * th * stride, t * th * stride + rows_in, axis=1)
         for t in range(n_tiles)],
        axis=1)                                # (N, n_tiles, rows_in, W_pad, Cin_p)

    in_block = rows_in * w_pad * cin_p * itemsize
    out_block = th * wo * cout_p * itemsize
    weight_bytes = wd.size * 4 + wp.size * 2 + bp.size * 4
    vmem_limit = int(min(max(4 * (in_block + out_block) + weight_bytes, 16 << 20),
                         48 << 20))

    kernel = functools.partial(_ds_kernel, stride=stride,
                               kh=kh, kw=kw, th=th, wo=wo)

    out_nhwc = pl.pallas_call(
        kernel,
        out_shape=jax.ShapeDtypeStruct((n, ho, wo, cout_p), x_nchw.dtype),
        grid_spec=pltpu.PrefetchScalarGridSpec(
            num_scalar_prefetch=0,
            grid=(n, n_tiles),
            in_specs=[
                pl.BlockSpec((None, None, rows_in, w_pad, cin_p),
                             lambda b, t: (b, t, 0, 0, 0)),
                pl.BlockSpec((kh, kw, cin_p), lambda b, t: (0, 0, 0)),
                pl.BlockSpec((cin_p, cout_p), lambda b, t: (0, 0)),
                pl.BlockSpec((1, cout_p), lambda b, t: (0, 0)),
            ],
            out_specs=pl.BlockSpec((None, th, wo, cout_p),
                                   lambda b, t: (b, t, 0, 0)),
        ),
        compiler_params=pltpu.CompilerParams(
            dimension_semantics=("parallel", "parallel"),
            vmem_limit_bytes=vmem_limit),
    )(x_tiles, wd, wp, bp)

    out = out_nhwc[..., :cout]                  # drop lane padding
    return jnp.transpose(out, (0, 3, 1, 2))     # back to NCHW


def _reference(x_nchw, w_depth, b_depth, w_point, b_point, *, stride, padding):
    cin = x_nchw.shape[1]
    dw = lax.conv_general_dilated(
        x_nchw, w_depth, window_strides=(stride, stride),
        padding=[(padding, padding), (padding, padding)],
        dimension_numbers=("NCHW", "OIHW", "NCHW"),
        feature_group_count=cin,
    ) + b_depth.reshape(1, -1, 1, 1)
    pw = lax.conv_general_dilated(
        dw, w_point, window_strides=(1, 1), padding=[(0, 0), (0, 0)],
        dimension_numbers=("NCHW", "OIHW", "NCHW"),
    ) + b_point.reshape(1, -1, 1, 1)
    return pw


if __name__ == "__main__":
    # Small shapes consistent with the module: NCHW input.
    N, CIN, H, W = 2, 4, 16, 16
    COUT, KD, STRIDE, PAD = 8, 3, 1, 1

    key = jax.random.PRNGKey(0)
    kx, k1, k2, k3, k4 = jax.random.split(key, 5)

    x = jax.random.normal(kx, (N, CIN, H, W), dtype=jnp.float32)

    # Deterministic parameter init (PyTorch-style uniform fan-in bounds).
    bound_d = 1.0 / (1 * KD * KD) ** 0.5
    w_depth = jax.random.uniform(k1, (CIN, 1, KD, KD), jnp.float32,
                                 -bound_d, bound_d)
    b_depth = jax.random.uniform(k2, (CIN,), jnp.float32, -bound_d, bound_d)

    bound_p = 1.0 / (CIN * 1 * 1) ** 0.5
    w_point = jax.random.uniform(k3, (COUT, CIN, 1, 1), jnp.float32,
                                 -bound_p, bound_p)
    b_point = jax.random.uniform(k4, (COUT,), jnp.float32, -bound_p, bound_p)

    # tile_h=8 -> 2 H-tiles per image: exercises the halo'd spatial tiling and
    # the 2-axis parallel grid.
    out = depthwise_separable(x, w_depth, b_depth, w_point, b_point,
                              stride=STRIDE, padding=PAD, tile_h=8)
    out = jax.block_until_ready(out)

    ref = _reference(x, w_depth, b_depth, w_point, b_point,
                     stride=STRIDE, padding=PAD)
    assert out.shape == ref.shape, (out.shape, ref.shape)
    # bf16 MXU operands -> looser tolerance than pure-f32 (expected err ~3e-3).
    max_err = float(jnp.max(jnp.abs(out - ref)))
    assert max_err < 5e-2, f"mismatch vs reference: max abs err {max_err}"

    print("KERNEL_OK")
</pallas_src>

<mosaic_0001>
module attributes {stable_mosaic.version = 11 : i64} {
  func.func @_ds_kernel(%arg0: i32, %arg1: i32, %arg2: memref<1x1x10x18x128xf32, #tpu.memory_space<vmem>>, %arg3: memref<3x3x128xf32, #tpu.memory_space<vmem>>, %arg4: memref<128x128xbf16, #tpu.memory_space<vmem>>, %arg5: memref<1x128xf32, #tpu.memory_space<vmem>>, %arg6: memref<1x8x16x128xf32, #tpu.memory_space<vmem>>) attributes {dimension_semantics = [#tpu.dimension_semantics<parallel>, #tpu.dimension_semantics<parallel>], iteration_bounds = array<i64: 2, 2>, scalar_prefetch = 0 : i64, scratch_operands = 0 : i64, tpu.core_type = #tpu.core_type<tc>, window_params = [{transform_indices = @transform_0, window_bounds = array<i64: 1, 1, 10, 18, 128>}, {pipeline_mode = #tpu.pipeline_mode<synchronous>, transform_indices = @transform_1, window_bounds = array<i64: 3, 3, 128>}, {pipeline_mode = #tpu.pipeline_mode<synchronous>, transform_indices = @transform_2, window_bounds = array<i64: 128, 128>}, {pipeline_mode = #tpu.pipeline_mode<synchronous>, transform_indices = @transform_3, window_bounds = array<i64: 1, 128>}, {transform_indices = @transform_4, window_bounds = array<i64: 1, 8, 16, 128>}]} {
    %c0 = arith.constant 0 : index
    %c0_0 = arith.constant 0 : index
    %c0_1 = arith.constant 0 : index
    %c0_2 = arith.constant 0 : index
    %c0_3 = arith.constant 0 : index
    %0 = vector.load %arg2[%c0, %c0_0, %c0_1, %c0_2, %c0_3] : memref<1x1x10x18x128xf32, #tpu.memory_space<vmem>>, vector<1x1x10x18x128xf32>
    %1 = vector.shape_cast %0 : vector<1x1x10x18x128xf32> to vector<10x18x128xf32>
    %2 = vector.extract_strided_slice %1 {offsets = [0, 0, 0], sizes = [8, 16, 128], strides = [1, 1, 1]} : vector<10x18x128xf32> to vector<8x16x128xf32>
    %c0_4 = arith.constant 0 : index
    %c0_5 = arith.constant 0 : index
    %c0_6 = arith.constant 0 : index
    %3 = vector.load %arg3[%c0_4, %c0_5, %c0_6] : memref<3x3x128xf32, #tpu.memory_space<vmem>>, vector<1x1x128xf32>
    %4 = vector.shape_cast %3 : vector<1x1x128xf32> to vector<128xf32>
    %5 = vector.shape_cast %4 : vector<128xf32> to vector<1x1x128xf32>
    %6 = vector.broadcast %5 : vector<1x1x128xf32> to vector<8x16x128xf32>
    %7 = arith.mulf %2, %6 : vector<8x16x128xf32>
    %8 = vector.extract_strided_slice %1 {offsets = [0, 1, 0], sizes = [8, 16, 128], strides = [1, 1, 1]} : vector<10x18x128xf32> to vector<8x16x128xf32>
    %c0_7 = arith.constant 0 : index
    %c1 = arith.constant 1 : index
    %c0_8 = arith.constant 0 : index
    %9 = vector.load %arg3[%c0_7, %c1, %c0_8] : memref<3x3x128xf32, #tpu.memory_space<vmem>>, vector<1x1x128xf32>
    %10 = vector.shape_cast %9 : vector<1x1x128xf32> to vector<128xf32>
    %11 = vector.shape_cast %10 : vector<128xf32> to vector<1x1x128xf32>
    %12 = vector.broadcast %11 : vector<1x1x128xf32> to vector<8x16x128xf32>
    %13 = arith.mulf %8, %12 : vector<8x16x128xf32>
    %14 = arith.addf %7, %13 : vector<8x16x128xf32>
    %15 = vector.extract_strided_slice %1 {offsets = [0, 2, 0], sizes = [8, 16, 128], strides = [1, 1, 1]} : vector<10x18x128xf32> to vector<8x16x128xf32>
    %c0_9 = arith.constant 0 : index
    %c2 = arith.constant 2 : index
    %c0_10 = arith.constant 0 : index
    %16 = vector.load %arg3[%c0_9, %c2, %c0_10] : memref<3x3x128xf32, #tpu.memory_space<vmem>>, vector<1x1x128xf32>
    %17 = vector.shape_cast %16 : vector<1x1x128xf32> to vector<128xf32>
    %18 = vector.shape_cast %17 : vector<128xf32> to vector<1x1x128xf32>
    %19 = vector.broadcast %18 : vector<1x1x128xf32> to vector<8x16x128xf32>
    %20 = arith.mulf %15, %19 : vector<8x16x128xf32>
    %21 = arith.addf %14, %20 : vector<8x16x128xf32>
    %22 = vector.extract_strided_slice %1 {offsets = [1, 0, 0], sizes = [8, 16, 128], strides = [1, 1, 1]} : vector<10x18x128xf32> to vector<8x16x128xf32>
    %c1_11 = arith.constant 1 : index
    %c0_12 = arith.constant 0 : index
    %c0_13 = arith.constant 0 : index
    %23 = vector.load %arg3[%c1_11, %c0_12, %c0_13] : memref<3x3x128xf32, #tpu.memory_space<vmem>>, vector<1x1x128xf32>
    %24 = vector.shape_cast %23 : vector<1x1x128xf32> to vector<128xf32>
    %25 = vector.shape_cast %24 : vector<128xf32> to vector<1x1x128xf32>
    %26 = vector.broadcast %25 : vector<1x1x128xf32> to vector<8x16x128xf32>
    %27 = arith.mulf %22, %26 : vector<8x16x128xf32>
    %28 = arith.addf %21, %27 : vector<8x16x128xf32>
    %29 = vector.extract_strided_slice %1 {offsets = [1, 1, 0], sizes = [8, 16, 128], strides = [1, 1, 1]} : vector<10x18x128xf32> to vector<8x16x128xf32>
    %c1_14 = arith.constant 1 : index
    %c1_15 = arith.constant 1 : index
    %c0_16 = arith.constant 0 : index
    %30 = vector.load %arg3[%c1_14, %c1_15, %c0_16] : memref<3x3x128xf32, #tpu.memory_space<vmem>>, vector<1x1x128xf32>
    %31 = vector.shape_cast %30 : vector<1x1x128xf32> to vector<128xf32>
    %32 = vector.shape_cast %31 : vector<128xf32> to vector<1x1x128xf32>
    %33 = vector.broadcast %32 : vector<1x1x128xf32> to vector<8x16x128xf32>
    %34 = arith.mulf %29, %33 : vector<8x16x128xf32>
    %35 = arith.addf %28, %34 : vector<8x16x128xf32>
    %36 = vector.extract_strided_slice %1 {offsets = [1, 2, 0], sizes = [8, 16, 128], strides = [1, 1, 1]} : vector<10x18x128xf32> to vector<8x16x128xf32>
    %c1_17 = arith.constant 1 : index
    %c2_18 = arith.constant 2 : index
    %c0_19 = arith.constant 0 : index
    %37 = vector.load %arg3[%c1_17, %c2_18, %c0_19] : memref<3x3x128xf32, #tpu.memory_space<vmem>>, vector<1x1x128xf32>
    %38 = vector.shape_cast %37 : vector<1x1x128xf32> to vector<128xf32>
    %39 = vector.shape_cast %38 : vector<128xf32> to vector<1x1x128xf32>
    %40 = vector.broadcast %39 : vector<1x1x128xf32> to vector<8x16x128xf32>
    %41 = arith.mulf %36, %40 : vector<8x16x128xf32>
    %42 = arith.addf %35, %41 : vector<8x16x128xf32>
    %43 = vector.extract_strided_slice %1 {offsets = [2, 0, 0], sizes = [8, 16, 128], strides = [1, 1, 1]} : vector<10x18x128xf32> to vector<8x16x128xf32>
    %c2_20 = arith.constant 2 : index
    %c0_21 = arith.constant 0 : index
    %c0_22 = arith.constant 0 : index
    %44 = vector.load %arg3[%c2_20, %c0_21, %c0_22] : memref<3x3x128xf32, #tpu.memory_space<vmem>>, vector<1x1x128xf32>
    %45 = vector.shape_cast %44 : vector<1x1x128xf32> to vector<128xf32>
    %46 = vector.shape_cast %45 : vector<128xf32> to vector<1x1x128xf32>
    %47 = vector.broadcast %46 : vector<1x1x128xf32> to vector<8x16x128xf32>
    %48 = arith.mulf %43, %47 : vector<8x16x128xf32>
    %49 = arith.addf %42, %48 : vector<8x16x128xf32>
    %50 = vector.extract_strided_slice %1 {offsets = [2, 1, 0], sizes = [8, 16, 128], strides = [1, 1, 1]} : vector<10x18x128xf32> to vector<8x16x128xf32>
    %c2_23 = arith.constant 2 : index
    %c1_24 = arith.constant 1 : index
    %c0_25 = arith.constant 0 : index
    %51 = vector.load %arg3[%c2_23, %c1_24, %c0_25] : memref<3x3x128xf32, #tpu.memory_space<vmem>>, vector<1x1x128xf32>
    %52 = vector.shape_cast %51 : vector<1x1x128xf32> to vector<128xf32>
    %53 = vector.shape_cast %52 : vector<128xf32> to vector<1x1x128xf32>
    %54 = vector.broadcast %53 : vector<1x1x128xf32> to vector<8x16x128xf32>
    %55 = arith.mulf %50, %54 : vector<8x16x128xf32>
    %56 = arith.addf %49, %55 : vector<8x16x128xf32>
    %57 = vector.extract_strided_slice %1 {offsets = [2, 2, 0], sizes = [8, 16, 128], strides = [1, 1, 1]} : vector<10x18x128xf32> to vector<8x16x128xf32>
    %c2_26 = arith.constant 2 : index
    %c2_27 = arith.constant 2 : index
    %c0_28 = arith.constant 0 : index
    %58 = vector.load %arg3[%c2_26, %c2_27, %c0_28] : memref<3x3x128xf32, #tpu.memory_space<vmem>>, vector<1x1x128xf32>
    %59 = vector.shape_cast %58 : vector<1x1x128xf32> to vector<128xf32>
    %60 = vector.shape_cast %59 : vector<128xf32> to vector<1x1x128xf32>
    %61 = vector.broadcast %60 : vector<1x1x128xf32> to vector<8x16x128xf32>
    %62 = arith.mulf %57, %61 : vector<8x16x128xf32>
    %63 = arith.addf %56, %62 : vector<8x16x128xf32>
    %64 = arith.truncf %63 : vector<8x16x128xf32> to vector<8x16x128xbf16>
    %65 = vector.shape_cast %64 : vector<8x16x128xbf16> to vector<128x128xbf16>
    %c0_29 = arith.constant 0 : index
    %c0_30 = arith.constant 0 : index
    %66 = vector.load %arg4[%c0_29, %c0_30] : memref<128x128xbf16, #tpu.memory_space<vmem>>, vector<128x128xbf16>
    %cst = arith.constant dense<0.000000e+00> : vector<128x128xf32>
    %67 = tpu.matmul %65, %66, %cst {dimension_numbers = #tpu.dot_dimension_numbers<[1], [0], [0], [1], [0, 0, 1, 1], [], []>} : vector<128x128xbf16>, vector<128x128xbf16>, vector<128x128xf32> -> vector<128x128xf32>
    %c0_31 = arith.constant 0 : index
    %c0_32 = arith.constant 0 : index
    %68 = vector.load %arg5[%c0_31, %c0_32] : memref<1x128xf32, #tpu.memory_space<vmem>>, vector<1x128xf32>
    %69 = vector.broadcast %68 : vector<1x128xf32> to vector<128x128xf32>
    %70 = arith.addf %67, %69 : vector<128x128xf32>
    %71 = vector.shape_cast %70 : vector<128x128xf32> to vector<8x16x128xf32>
    %c0_33 = arith.constant 0 : index
    %c0_34 = arith.constant 0 : index
    %c0_35 = arith.constant 0 : index
    %c0_36 = arith.constant 0 : index
    %72 = vector.load %arg6[%c0_33, %c0_34, %c0_35, %c0_36] : memref<1x8x16x128xf32, #tpu.memory_space<vmem>>, vector<1x8x16x128xf32>
    %73 = vector.shape_cast %72 : vector<1x8x16x128xf32> to vector<8x16x128xf32>
    %74 = vector.shape_cast %71 : vector<8x16x128xf32> to vector<1x8x16x128xf32>
    tpu.vector_store %arg6[%c0_33, %c0_34, %c0_35, %c0_36], %74 {strides = array<i32>} : memref<1x8x16x128xf32, #tpu.memory_space<vmem>>, vector<1x8x16x128xf32>,
    return
  }
  func.func @transform_0(%arg0: i32, %arg1: i32) -> (i32, i32, i32, i32, i32) {
    %c0_i32 = arith.constant 0 : i32
    %c0_i32_0 = arith.constant 0 : i32
    %c0_i32_1 = arith.constant 0 : i32
    %c0_i32_2 = arith.constant 0 : i32
    return %arg0, %arg1, %c0_i32, %c0_i32_0, %c0_i32_1 : i32, i32, i32, i32, i32
  }
  func.func @transform_1(%arg0: i32, %arg1: i32) -> (i32, i32, i32) {
    %c0_i32 = arith.constant 0 : i32
    %c0_i32_0 = arith.constant 0 : i32
    %c0_i32_1 = arith.constant 0 : i32
    %c0_i32_2 = arith.constant 0 : i32
    return %c0_i32, %c0_i32_0, %c0_i32_1 : i32, i32, i32
  }
  func.func @transform_2(%arg0: i32, %arg1: i32) -> (i32, i32) {
    %c0_i32 = arith.constant 0 : i32
    %c0_i32_0 = arith.constant 0 : i32
    %c0_i32_1 = arith.constant 0 : i32
    return %c0_i32, %c0_i32_0 : i32, i32
  }
  func.func @transform_3(%arg0: i32, %arg1: i32) -> (i32, i32) {
    %c0_i32 = arith.constant 0 : i32
    %c0_i32_0 = arith.constant 0 : i32
    %c0_i32_1 = arith.constant 0 : i32
    return %c0_i32, %c0_i32_0 : i32, i32
  }
  func.func @transform_4(%arg0: i32, %arg1: i32) -> (i32, i32, i32, i32) {
    %c0_i32 = arith.constant 0 : i32
    %c0_i32_0 = arith.constant 0 : i32
    %c0_i32_1 = arith.constant 0 : i32
    return %arg0, %arg1, %c0_i32, %c0_i32_0 : i32, i32, i32, i32
  }
}

</mosaic_0001>

<llo_original>
// kernel: tpu_custom_call.1
$region0: #{tpu_custom_call.1}
  #allocation0 [shape = 'u32[]', space=smem, size = 0x4, offset = 0x4, fixed_abs, tag = 'smem constant byte address 0x4 - core index']
  #allocation1 [shape = 'u32[72,128]{1,0:T(1,128)}', space=vmem, size = 0x9000, scoped, tag = 'internal scratch']
  %s0 = inlined_call_operand.vmem [shape: f32[2,2,10,18,128], index: 0, kind: input, shape index: {}]
  %s1 = inlined_call_operand.vmem [shape: f32[3,3,128], index: 1, kind: input, shape index: {}]
  %s2 = inlined_call_operand.vmem [shape: bf16[128,128], index: 2, kind: input, shape index: {}]
  %s3 = inlined_call_operand.vmem [shape: f32[1,128], index: 3, kind: input, shape index: {}]
  %s4 = inlined_call_operand.hbm [shape: f32[2,16,16,128], index: 4, kind: output, shape index: {}]
  %s5 = sld [smem:[#allocation0]]
  $region49: #{tpu_custom_call.1} parent=0
    _
  %s7 = ssub.s32 1, %s5
  %s8 = scalar_select 0, %s7, %s5
  $region1: #{tpu_custom_call.1} parent=0
    #allocation2 [shape = 'u8[131072]{0}', space=vmem, size = 0x20000, scoped, tag = 'output window, operand 0']
    #allocation3 [shape = 's32[2]{0}', space=sflag, size = 0x8, scoped, tag = 'scoped memory for tpu_custom_call.1']
    %9 = vsyncpa [#allocation3], 0
    %s10 = scalar_lea.sflag [#allocation3], 1
    %11 = vsyncpa %s10, 0
    loop: start=0, step=1, limit=6
    $region2: #{tpu_custom_call.1} parent=1 // loop_pre_header
      _
    $region3: #{tpu_custom_call.1} parent=1 // loop_header
      %s13 = sphi 0, %s17
      %p14 = scmp.ge.s32.totalorder %s13, 6
      %s20 = sphi 0, %s32
      %s21 = sphi 0, %s28
      %s22 = sphi 0, %s20
      %s23 = sphi 0, %s21
      %s24 = sphi 0, %s22
      %s25 = sphi 0, %s23
      %s37 = sphi 0, %s39
      %s40 = sphi 0, %s37
      %s41 = sphi 0, %s40
      %s57 = sphi 0, %s41
      %s61 = sphi 0, %s61
      %s63 = sphi 0, %s61
      %s64 = sphi 0, %s63
      %s78 = sphi 0, %s64
      %s82 = sphi 0, %s82
      %s84 = sphi 0, %s82
      %s85 = sphi 0, %s84
      %s99 = sphi 0, %s85
      %s103 = sphi 0, %s103
      %s105 = sphi 0, %s103
      %s106 = sphi 0, %s105
      %s120 = sphi 0, %s106
      %s128 = sphi 0, %s130
      %s131 = sphi 0, %s128
      %s132 = sphi 0, %s131
      %s148 = sphi 0, %s132
    $region4: #{tpu_custom_call.1} parent=1 // loop_header_branch
      %16 = sbr.rel (%p14) target = $region8
    $region5: #{tpu_custom_call.1} parent=1 // loop_body
      %s18 = ssub.s32 %s13, 1
      %s19 = ssub.s32 %s13, 2
      %s26 = sadd.s32 1, %s21
      %p27 = scmp.ge.s32.totalorder %s26, 2
      %s28 = scalar_select %p27, 0, %s26
      %s29 = sadd.s32 1, %s20
      %s30 = scalar_select %p27, %s29, %s20
      %p31 = scmp.ge.s32.totalorder %s30, 2
      %s32 = scalar_select %p31, 0, %s30
      %s33 = ssub.s32 %s20, %s32
      %s34 = ssub.s32 %s21, %s28
      %s35 = sor.u32 %s33, %s34
      %p36 = scmp.eq.s32.totalorder %s35, 0
      %s38 = sadd.s32 %s37, 1
      %s39 = scalar_select %p36, %s37, %s38
      %p42 = pneg %p36
      %p43 = scmp.eq.s32.totalorder %s13, 3
      %p44 = por %p42, %p43
      %p45 = scmp.ne.s32.totalorder %s37, %s40
      %p46 = scmp.eq.s32.totalorder %s13, 0
      %p47 = por %p45, %p46
      %p48 = scmp.ne.s32.totalorder %s37, %s40
      %p49 = scmp.eq.s32.totalorder %s18, 3
      %p50 = por %p48, %p49
      %p51 = scmp.ne.s32.totalorder %s40, %s41
      %p52 = scmp.eq.s32.totalorder %s18, 0
      %p53 = por %p51, %p52
      %p54 = scmp.ne.s32.totalorder %s40, %s41
      %p55 = scmp.eq.s32.totalorder %s19, 3
      %p56 = por %p54, %p55
      %p58 = scmp.ne.s32.totalorder %s41, %s57
      %p59 = scmp.eq.s32.totalorder %s19, 0
      %p60 = por %p58, %p59
      %s62 = sadd.s32 %s61, 1
      %p65 = scmp.eq.s32.totalorder %s13, 3
      %p66 = scmp.ne.s32.totalorder %s61, %s63
      %p67 = scmp.eq.s32.totalorder %s13, 0
      %p68 = por %p66, %p67
      %p69 = scmp.ne.s32.totalorder %s61, %s63
      %p70 = scmp.eq.s32.totalorder %s18, 3
      %p71 = por %p69, %p70
      %p72 = scmp.ne.s32.totalorder %s63, %s64
      %p73 = scmp.eq.s32.totalorder %s18, 0
      %p74 = por %p72, %p73
      %p75 = scmp.ne.s32.totalorder %s63, %s64
      %p76 = scmp.eq.s32.totalorder %s19, 3
      %p77 = por %p75, %p76
      %p79 = scmp.ne.s32.totalorder %s64, %s78
      %p80 = scmp.eq.s32.totalorder %s19, 0
      %p81 = por %p79, %p80
      %s83 = sadd.s32 %s82, 1
      %p86 = scmp.eq.s32.totalorder %s13, 3
      %p87 = scmp.ne.s32.totalorder %s82, %s84
      %p88 = scmp.eq.s32.totalorder %s13, 0
      %p89 = por %p87, %p88
      %p90 = scmp.ne.s32.totalorder %s82, %s84
      %p91 = scmp.eq.s32.totalorder %s18, 3
      %p92 = por %p90, %p91
      %p93 = scmp.ne.s32.totalorder %s84, %s85
      %p94 = scmp.eq.s32.totalorder %s18, 0
      %p95 = por %p93, %p94
      %p96 = scmp.ne.s32.totalorder %s84, %s85
      %p97 = scmp.eq.s32.totalorder %s19, 3
      %p98 = por %p96, %p97
      %p100 = scmp.ne.s32.totalorder %s85, %s99
      %p101 = scmp.eq.s32.totalorder %s19, 0
      %p102 = por %p100, %p101
      %s104 = sadd.s32 %s103, 1
      %p107 = scmp.eq.s32.totalorder %s13, 3
      %p108 = scmp.ne.s32.totalorder %s103, %s105
      %p109 = scmp.eq.s32.totalorder %s13, 0
      %p110 = por %p108, %p109
      %p111 = scmp.ne.s32.totalorder %s103, %s105
      %p112 = scmp.eq.s32.totalorder %s18, 3
      %p113 = por %p111, %p112
      %p114 = scmp.ne.s32.totalorder %s105, %s106
      %p115 = scmp.eq.s32.totalorder %s18, 0
      %p116 = por %p114, %p115
      %p117 = scmp.ne.s32.totalorder %s105, %s106
      %p118 = scmp.eq.s32.totalorder %s19, 3
      %p119 = por %p117, %p118
      %p121 = scmp.ne.s32.totalorder %s106, %s120
      %p122 = scmp.eq.s32.totalorder %s19, 0
      %p123 = por %p121, %p122
      %s124 = ssub.s32 %s20, %s32
      %s125 = ssub.s32 %s21, %s28
      %s126 = sor.u32 %s124, %s125
      %p127 = scmp.eq.s32.totalorder %s126, 0
      %s129 = sadd.s32 %s128, 1
      %s130 = scalar_select %p127, %s128, %s129
      %p133 = pneg %p127
      %p134 = scmp.eq.s32.totalorder %s13, 3
      %p135 = por %p133, %p134
      %p136 = scmp.ne.s32.totalorder %s128, %s131
      %p137 = scmp.eq.s32.totalorder %s13, 0
      %p138 = por %p136, %p137
      %p139 = scmp.ne.s32.totalorder %s128, %s131
      %p140 = scmp.eq.s32.totalorder %s18, 3
      %p141 = por %p139, %p140
      %p142 = scmp.ne.s32.totalorder %s131, %s132
      %p143 = scmp.eq.s32.totalorder %s18, 0
      %p144 = por %p142, %p143
      %p145 = scmp.ne.s32.totalorder %s131, %s132
      %p146 = scmp.eq.s32.totalorder %s19, 3
      %p147 = por %p145, %p146
      %p149 = scmp.ne.s32.totalorder %s132, %s148
      %p150 = scmp.eq.s32.totalorder %s19, 0
      %p151 = por %p149, %p150
      %p152 = scmp.le.s32.totalorder 1, %s13
      %p153 = scmp.lt.s32.totalorder %s13, 5
      %p154 = pnand %p152, %p153
      %p155 = pneg %p154
      // Predicated region
      $region9: #{tpu_custom_call.1} parent=5 // pred_check
        _
      $region10: #{tpu_custom_call.1} parent=5 // pred_check_branch
        %157 = sbr.rel (%p154) target = $region12
      $region11: #{tpu_custom_call.1} parent=5 // pred_region
        %s158 = ssub.s32 %s13, 1
        // Predicated region
        $region13: #{tpu_custom_call.1} parent=11 // pred_check
          %p159 = pneg %p74
        $region14: #{tpu_custom_call.1} parent=11 // pred_check_branch
          %161 = sbr.rel (%p159) target = $region16
        $region15: #{tpu_custom_call.1} parent=11 // pred_region
          _
        $region16: #{tpu_custom_call.1} parent=11 // pred_fallthru
          _
        // Predicated region
        $region17: #{tpu_custom_call.1} parent=11 // pred_check
          %p162 = pneg %p95
        $region18: #{tpu_custom_call.1} parent=11 // pred_check_branch
          %164 = sbr.rel (%p162) target = $region20
        $region19: #{tpu_custom_call.1} parent=11 // pred_region
          _
        $region20: #{tpu_custom_call.1} parent=11 // pred_fallthru
          _
        // Predicated region
        $region21: #{tpu_custom_call.1} parent=11 // pred_check
          %p165 = pneg %p116
        $region22: #{tpu_custom_call.1} parent=11 // pred_check_branch
          %167 = sbr.rel (%p165) target = $region24
        $region23: #{tpu_custom_call.1} parent=11 // pred_region
          _
        $region24: #{tpu_custom_call.1} parent=11 // pred_fallthru
          _
      $region12: #{tpu_custom_call.1} parent=5 // pred_fallthru
        _
      %p168 = scmp.lt.s32.totalorder %s13, 4
      // Predicated region
      $region25: #{tpu_custom_call.1} parent=5 // pred_check
        %p169 = pneg %p168
      $region26: #{tpu_custom_call.1} parent=5 // pred_check_branch
        %171 = sbr.rel (%p169) target = $region28
      $region27: #{tpu_custom_call.1} parent=5 // pred_region
        // Predicated region
        $region29: #{tpu_custom_call.1} parent=27 // pred_check
          %p172 = pneg %p47
        $region30: #{tpu_custom_call.1} parent=27 // pred_check_branch
          %174 = sbr.rel (%p172) target = $region32
        $region31: #{tpu_custom_call.1} parent=27 // pred_region
          %p175 = scmp.lt.s32.totalorder %s20, 1
          %s176 = scalar_select %p175, %s20, 1
          %p177 = scmp.lt.s32.totalorder %s21, 1
          %s178 = scalar_select %p177, %s21, 1
          %s179 = smul.addr %s178, 30
          %s180 = smul.addr %s176, 60
          %s181 = sadd.s32 %s179, %s180
          %s182 = smul.addr %s181, 8
          %s183 = scalar_lea.vmem %s0, %s182
        $region32: #{tpu_custom_call.1} parent=27 // pred_fallthru
          _
      $region28: #{tpu_custom_call.1} parent=5 // pred_fallthru
        _
      %p184 = scmp.le.s32.totalorder 1, %s13
      %p185 = scmp.lt.s32.totalorder %s13, 5
      %p186 = pnand %p184, %p185
      %p187 = pneg %p186
      // Predicated region
      $region33: #{tpu_custom_call.1} parent=5 // pred_check
        _
      $region34: #{tpu_custom_call.1} parent=5 // pred_check_branch
        %189 = sbr.rel (%p186) target = $region36
      $region35: #{tpu_custom_call.1} parent=5 // pred_region
        %s190 = ssub.s32 %s13, 1
        %p191 = scmp.lt.s32.totalorder %s22, 1
        %s192 = scalar_select %p191, %s22, 1
        %p193 = scmp.lt.s32.totalorder %s23, 1
        %s194 = scalar_select %p193, %s23, 1
        %s195 = smul.addr %s194, 30
        %s196 = smul.addr %s192, 60
        %s197 = sadd.s32 %s195, %s196
        %s198 = smul.addr %s197, 8
        %s199 = scalar_lea.vmem %s0, %s198
        %p200 = pneg %p53
        %p201 = pneg %p50
        %p202 = pneg %p74
        %p203 = pneg %p71
        %p204 = pneg %p95
        %p205 = pneg %p92
        %p206 = pneg %p116
        %p207 = pneg %p113
        %p208 = pneg %p144
        %p209 = pneg %p141
        %s210 = sand.u32 %s131, 1
        %s211 = scalar_lea.sflag [#allocation3], %s210
        %s212 = sand.u32 %s131, 1
        %s213 = smul.addr %s212, 128
        %s214 = scalar_lea.vmem [#allocation2], %s213
        %p215 = scmp.lt.s32.totalorder %s22, 1
        %s216 = scalar_select %p215, %s22, 1
        %p217 = scmp.lt.s32.totalorder %s23, 1
        %s218 = scalar_select %p217, %s23, 1
        %s219 = smul.addr %s218, 30
        %s220 = smul.addr %s216, 60
        %s221 = sadd.s32 %s219, %s220
        %s222 = smul.addr %s221, 8
        %s223 = scalar_lea.vmem %s0, %s222
        %s224 = smul.u32 8, %s23
        %v225 = vld [vmem:[%s223] sm:$0xff]
        %v226 = vld [vmem:[%s223 + $0x8] sm:$0xff]
        %v227 = vld [vmem:[%s223 + $0x10] sm:$0x3]
        %v228 = vld [vmem:[%s223 + $0x18] sm:$0xff]
        %v229 = vld [vmem:[%s223 + $0x20] sm:$0xff]
        %v230 = vld [vmem:[%s223 + $0x28] sm:$0x3]
        %v231 = vld [vmem:[%s223 + $0x30] sm:$0xff]
        %v232 = vld [vmem:[%s223 + $0x38] sm:$0xff]
        %v233 = vld [vmem:[%s223 + $0x40] sm:$0x3]
        %v234 = vld [vmem:[%s223 + $0x48] sm:$0xff]
        %v235 = vld [vmem:[%s223 + $0x50] sm:$0xff]
        %v236 = vld [vmem:[%s223 + $0x58] sm:$0x3]
        %v237 = vld [vmem:[%s223 + $0x60] sm:$0xff]
        %v238 = vld [vmem:[%s223 + $0x68] sm:$0xff]
        %v239 = vld [vmem:[%s223 + $0x70] sm:$0x3]
        %v240 = vld [vmem:[%s223 + $0x78] sm:$0xff]
        %v241 = vld [vmem:[%s223 + $0x80] sm:$0xff]
        %v242 = vld [vmem:[%s223 + $0x88] sm:$0x3]
        %v243 = vld [vmem:[%s223 + $0x90] sm:$0xff]
        %v244 = vld [vmem:[%s223 + $0x98] sm:$0xff]
        %v245 = vld [vmem:[%s223 + $0xa0] sm:$0x3]
        %v246 = vld [vmem:[%s223 + $0xa8] sm:$0xff]
        %v247 = vld [vmem:[%s223 + $0xb0] sm:$0xff]
        %v248 = vld [vmem:[%s223 + $0xb8] sm:$0x3]
        %v249 = vld [vmem:[%s223 + $0xc0] sm:$0xff]
        %v250 = vld [vmem:[%s223 + $0xc8] sm:$0xff]
        %v251 = vld [vmem:[%s223 + $0xd0] sm:$0x3]
        %v252 = vld [vmem:[%s223 + $0xd8] sm:$0xff]
        %v253 = vld [vmem:[%s223 + $0xe0] sm:$0xff]
        %v254 = vld [vmem:[%s223 + $0xe8] sm:$0x3]
        %v255 = vld [vmem:[%s1] sm:$0x1]
        %v256 = vperm.slane %v255, 0
        %v257 = vmul.f32 %v225, %v256
        %v258 = vmul.f32 %v226, %v256
        %v259 = vmul.f32 %v228, %v256
        %v260 = vmul.f32 %v229, %v256
        %v261 = vmul.f32 %v231, %v256
        %v262 = vmul.f32 %v232, %v256
        %v263 = vmul.f32 %v234, %v256
        %v264 = vmul.f32 %v235, %v256
        %v265 = vmul.f32 %v237, %v256
        %v266 = vmul.f32 %v238, %v256
        %v267 = vmul.f32 %v240, %v256
        %v268 = vmul.f32 %v241, %v256
        %v269 = vmul.f32 %v243, %v256
        %v270 = vmul.f32 %v244, %v256
        %v271 = vmul.f32 %v246, %v256
        %v272 = vmul.f32 %v247, %v256
        %v273 = vld [vmem:[%s1 + $0x1] sm:$0x1]
        %v274 = vperm.slane %v273, 0
        %v275 = vmul.f32 %v225, %v274
        %v276 = vmul.f32 %v226, %v274
        %v277 = vmul.f32 %v227, %v274
        %v278 = vmul.f32 %v228, %v274
        %v279 = vmul.f32 %v229, %v274
        %v280 = vmul.f32 %v230, %v274
        %v281 = vmul.f32 %v231, %v274
        %v282 = vmul.f32 %v232, %v274
        %v283 = vmul.f32 %v233, %v274
        %v284 = vmul.f32 %v234, %v274
        %v285 = vmul.f32 %v235, %v274
        %v286 = vmul.f32 %v236, %v274
        %v287 = vmul.f32 %v237, %v274
        %v288 = vmul.f32 %v238, %v274
        %v289 = vmul.f32 %v239, %v274
        %v290 = vmul.f32 %v240, %v274
        %v291 = vmul.f32 %v241, %v274
        %v292 = vmul.f32 %v242, %v274
        %v293 = vmul.f32 %v243, %v274
        %v294 = vmul.f32 %v244, %v274
        %v295 = vmul.f32 %v245, %v274
        %v296 = vmul.f32 %v246, %v274
        %v297 = vmul.f32 %v247, %v274
        %v298 = vmul.f32 %v248, %v274
        %vm323 = vcmask 1046528
        %v324 = vrot.slane %v275, 1
        %v325 = vrot.slane %v276, 1
        %v326 = vsel %vm323, %v324, %v325
        %v327 = vrot.slane %v277, 1
        %v328 = vsel %vm323, %v325, %v327
        %v329 = vrot.slane %v278, 1
        %v330 = vrot.slane %v279, 1
        %v331 = vsel %vm323, %v329, %v330
        %v332 = vrot.slane %v280, 1
        %v333 = vsel %vm323, %v330, %v332
        %v334 = vrot.slane %v281, 1
        %v335 = vrot.slane %v282, 1
        %v336 = vsel %vm323, %v334, %v335
        %v337 = vrot.slane %v283, 1
        %v338 = vsel %vm323, %v335, %v337
        %v339 = vrot.slane %v284, 1
        %v340 = vrot.slane %v285, 1
        %v341 = vsel %vm323, %v339, %v340
        %v342 = vrot.slane %v286, 1
        %v343 = vsel %vm323, %v340, %v342
        %v344 = vrot.slane %v287, 1
        %v345 = vrot.slane %v288, 1
        %v346 = vsel %vm323, %v344, %v345
        %v347 = vrot.slane %v289, 1
        %v348 = vsel %vm323, %v345, %v347
        %v349 = vrot.slane %v290, 1
        %v350 = vrot.slane %v291, 1
        %v351 = vsel %vm323, %v349, %v350
        %v352 = vrot.slane %v292, 1
        %v353 = vsel %vm323, %v350, %v352
        %v354 = vrot.slane %v293, 1
        %v355 = vrot.slane %v294, 1
        %v356 = vsel %vm323, %v354, %v355
        %v357 = vrot.slane %v295, 1
        %v358 = vsel %vm323, %v355, %v357
        %v359 = vrot.slane %v296, 1
        %v360 = vrot.slane %v297, 1
        %v361 = vsel %vm323, %v359, %v360
        %v362 = vrot.slane %v298, 1
        %v363 = vsel %vm323, %v360, %v362
        %v380 = vadd.f32 %v257, %v326
        %v381 = vadd.f32 %v258, %v328
        %v382 = vadd.f32 %v259, %v331
        %v383 = vadd.f32 %v260, %v333
        %v384 = vadd.f32 %v261, %v336
        %v385 = vadd.f32 %v262, %v338
        %v386 = vadd.f32 %v263, %v341
        %v387 = vadd.f32 %v264, %v343
        %v388 = vadd.f32 %v265, %v346
        %v389 = vadd.f32 %v266, %v348
        %v390 = vadd.f32 %v267, %v351
        %v391 = vadd.f32 %v268, %v353
        %v392 = vadd.f32 %v269, %v356
        %v393 = vadd.f32 %v270, %v358
        %v394 = vadd.f32 %v271, %v361
        %v395 = vadd.f32 %v272, %v363
        %v396 = vld [vmem:[%s1 + $0x2] sm:$0x1]
        %v397 = vperm.slane %v396, 0
        %v398 = vmul.f32 %v225, %v397
        %v399 = vmul.f32 %v226, %v397
        %v400 = vmul.f32 %v227, %v397
        %v401 = vmul.f32 %v228, %v397
        %v402 = vmul.f32 %v229, %v397
        %v403 = vmul.f32 %v230, %v397
        %v404 = vmul.f32 %v231, %v397
        %v405 = vmul.f32 %v232, %v397
        %v406 = vmul.f32 %v233, %v397
        %v407 = vmul.f32 %v234, %v397
        %v408 = vmul.f32 %v235, %v397
        %v409 = vmul.f32 %v236, %v397
        %v410 = vmul.f32 %v237, %v397
        %v411 = vmul.f32 %v238, %v397
        %v412 = vmul.f32 %v239, %v397
        %v413 = vmul.f32 %v240, %v397
        %v414 = vmul.f32 %v241, %v397
        %v415 = vmul.f32 %v242, %v397
        %v416 = vmul.f32 %v243, %v397
        %v417 = vmul.f32 %v244, %v397
        %v418 = vmul.f32 %v245, %v397
        %v419 = vmul.f32 %v246, %v397
        %v420 = vmul.f32 %v247, %v397
        %v421 = vmul.f32 %v248, %v397
        %vm446 = vcmask 1045504
        %v447 = vrot.slane %v398, 2
        %v448 = vrot.slane %v399, 2
        %v449 = vsel %vm446, %v447, %v448
        %v450 = vrot.slane %v400, 2
        %v451 = vsel %vm446, %v448, %v450
        %v452 = vrot.slane %v401, 2
        %v453 = vrot.slane %v402, 2
        %v454 = vsel %vm446, %v452, %v453
        %v455 = vrot.slane %v403, 2
        %v456 = vsel %vm446, %v453, %v455
        %v457 = vrot.slane %v404, 2
        %v458 = vrot.slane %v405, 2
        %v459 = vsel %vm446, %v457, %v458
        %v460 = vrot.slane %v406, 2
        %v461 = vsel %vm446, %v458, %v460
        %v462 = vrot.slane %v407, 2
        %v463 = vrot.slane %v408, 2
        %v464 = vsel %vm446, %v462, %v463
        %v465 = vrot.slane %v409, 2
        %v466 = vsel %vm446, %v463, %v465
        %v467 = vrot.slane %v410, 2
        %v468 = vrot.slane %v411, 2
        %v469 = vsel %vm446, %v467, %v468
        %v470 = vrot.slane %v412, 2
        %v471 = vsel %vm446, %v468, %v470
        %v472 = vrot.slane %v413, 2
        %v473 = vrot.slane %v414, 2
        %v474 = vsel %vm446, %v472, %v473
        %v475 = vrot.slane %v415, 2
        %v476 = vsel %vm446, %v473, %v475
        %v477 = vrot.slane %v416, 2
        %v478 = vrot.slane %v417, 2
        %v479 = vsel %vm446, %v477, %v478
        %v480 = vrot.slane %v418, 2
        %v481 = vsel %vm446, %v478, %v480
        %v482 = vrot.slane %v419, 2
        %v483 = vrot.slane %v420, 2
        %v484 = vsel %vm446, %v482, %v483
        %v485 = vrot.slane %v421, 2
        %v486 = vsel %vm446, %v483, %v485
        %v503 = vadd.f32 %v380, %v449
        %v504 = vadd.f32 %v381, %v451
        %v505 = vadd.f32 %v382, %v454
        %v506 = vadd.f32 %v383, %v456
        %v507 = vadd.f32 %v384, %v459
        %v508 = vadd.f32 %v385, %v461
        %v509 = vadd.f32 %v386, %v464
        %v510 = vadd.f32 %v387, %v466
        %v511 = vadd.f32 %v388, %v469
        %v512 = vadd.f32 %v389, %v471
        %v513 = vadd.f32 %v390, %v474
        %v514 = vadd.f32 %v391, %v476
        %v515 = vadd.f32 %v392, %v479
        %v516 = vadd.f32 %v393, %v481
        %v517 = vadd.f32 %v394, %v484
        %v518 = vadd.f32 %v395, %v486
        %s519 = scalar_lea.vmem %s1, 4
        %v520 = vld [vmem:[%s519] sm:$0x1]
        %v521 = vperm.slane %v520, 0
        %v522 = vmul.f32 %v228, %v521
        %v523 = vmul.f32 %v229, %v521
        %v524 = vmul.f32 %v231, %v521
        %v525 = vmul.f32 %v232, %v521
        %v526 = vmul.f32 %v234, %v521
        %v527 = vmul.f32 %v235, %v521
        %v528 = vmul.f32 %v237, %v521
        %v529 = vmul.f32 %v238, %v521
        %v530 = vmul.f32 %v240, %v521
        %v531 = vmul.f32 %v241, %v521
        %v532 = vmul.f32 %v243, %v521
        %v533 = vmul.f32 %v244, %v521
        %v534 = vmul.f32 %v246, %v521
        %v535 = vmul.f32 %v247, %v521
        %v536 = vmul.f32 %v249, %v521
        %v537 = vmul.f32 %v250, %v521
        %v538 = vadd.f32 %v503, %v522
        %v539 = vadd.f32 %v504, %v523
        %v540 = vadd.f32 %v505, %v524
        %v541 = vadd.f32 %v506, %v525
        %v542 = vadd.f32 %v507, %v526
        %v543 = vadd.f32 %v508, %v527
        %v544 = vadd.f32 %v509, %v528
        %v545 = vadd.f32 %v510, %v529
        %v546 = vadd.f32 %v511, %v530
        %v547 = vadd.f32 %v512, %v531
        %v548 = vadd.f32 %v513, %v532
        %v549 = vadd.f32 %v514, %v533
        %v550 = vadd.f32 %v515, %v534
        %v551 = vadd.f32 %v516, %v535
        %v552 = vadd.f32 %v517, %v536
        %v553 = vadd.f32 %v518, %v537
        %v554 = vld [vmem:[%s519 + $0x1] sm:$0x1]
        %v555 = vperm.slane %v554, 0
        %v556 = vmul.f32 %v228, %v555
        %v557 = vmul.f32 %v229, %v555
        %v558 = vmul.f32 %v230, %v555
        %v559 = vmul.f32 %v231, %v555
        %v560 = vmul.f32 %v232, %v555
        %v561 = vmul.f32 %v233, %v555
        %v562 = vmul.f32 %v234, %v555
        %v563 = vmul.f32 %v235, %v555
        %v564 = vmul.f32 %v236, %v555
        %v565 = vmul.f32 %v237, %v555
        %v566 = vmul.f32 %v238, %v555
        %v567 = vmul.f32 %v239, %v555
        %v568 = vmul.f32 %v240, %v555
        %v569 = vmul.f32 %v241, %v555
        %v570 = vmul.f32 %v242, %v555
        %v571 = vmul.f32 %v243, %v555
        %v572 = vmul.f32 %v244, %v555
        %v573 = vmul.f32 %v245, %v555
        %v574 = vmul.f32 %v246, %v555
        %v575 = vmul.f32 %v247, %v555
        %v576 = vmul.f32 %v248, %v555
        %v577 = vmul.f32 %v249, %v555
        %v578 = vmul.f32 %v250, %v555
        %v579 = vmul.f32 %v251, %v555
        %v604 = vrot.slane %v556, 1
        %v605 = vrot.slane %v557, 1
        %v606 = vsel %vm323, %v604, %v605
        %v607 = vrot.slane %v558, 1
        %v608 = vsel %vm323, %v605, %v607
        %v609 = vrot.slane %v559, 1
        %v610 = vrot.slane %v560, 1
        %v611 = vsel %vm323, %v609, %v610
        %v612 = vrot.slane %v561, 1
        %v613 = vsel %vm323, %v610, %v612
        %v614 = vrot.slane %v562, 1
        %v615 = vrot.slane %v563, 1
        %v616 = vsel %vm323, %v614, %v615
        %v617 = vrot.slane %v564, 1
        %v618 = vsel %vm323, %v615, %v617
        %v619 = vrot.slane %v565, 1
        %v620 = vrot.slane %v566, 1
        %v621 = vsel %vm323, %v619, %v620
        %v622 = vrot.slane %v567, 1
        %v623 = vsel %vm323, %v620, %v622
        %v624 = vrot.slane %v568, 1
        %v625 = vrot.slane %v569, 1
        %v626 = vsel %vm323, %v624, %v625
        %v627 = vrot.slane %v570, 1
        %v628 = vsel %vm323, %v625, %v627
        %v629 = vrot.slane %v571, 1
        %v630 = vrot.slane %v572, 1
        %v631 = vsel %vm323, %v629, %v630
        %v632 = vrot.slane %v573, 1
        %v633 = vsel %vm323, %v630, %v632
        %v634 = vrot.slane %v574, 1
        %v635 = vrot.slane %v575, 1
        %v636 = vsel %vm323, %v634, %v635
        %v637 = vrot.slane %v576, 1
        %v638 = vsel %vm323, %v635, %v637
        %v639 = vrot.slane %v577, 1
        %v640 = vrot.slane %v578, 1
        %v641 = vsel %vm323, %v639, %v640
        %v642 = vrot.slane %v579, 1
        %v643 = vsel %vm323, %v640, %v642
        %v660 = vadd.f32 %v538, %v606
        %v661 = vadd.f32 %v539, %v608
        %v662 = vadd.f32 %v540, %v611
        %v663 = vadd.f32 %v541, %v613
        %v664 = vadd.f32 %v542, %v616
        %v665 = vadd.f32 %v543, %v618
        %v666 = vadd.f32 %v544, %v621
        %v667 = vadd.f32 %v545, %v623
        %v668 = vadd.f32 %v546, %v626
        %v669 = vadd.f32 %v547, %v628
        %v670 = vadd.f32 %v548, %v631
        %v671 = vadd.f32 %v549, %v633
        %v672 = vadd.f32 %v550, %v636
        %v673 = vadd.f32 %v551, %v638
        %v674 = vadd.f32 %v552, %v641
        %v675 = vadd.f32 %v553, %v643
        %v676 = vld [vmem:[%s519 + $0x2] sm:$0x1]
        %v677 = vperm.slane %v676, 0
        %v678 = vmul.f32 %v228, %v677
        %v679 = vmul.f32 %v229, %v677
        %v680 = vmul.f32 %v230, %v677
        %v681 = vmul.f32 %v231, %v677
        %v682 = vmul.f32 %v232, %v677
        %v683 = vmul.f32 %v233, %v677
        %v684 = vmul.f32 %v234, %v677
        %v685 = vmul.f32 %v235, %v677
        %v686 = vmul.f32 %v236, %v677
        %v687 = vmul.f32 %v237, %v677
        %v688 = vmul.f32 %v238, %v677
        %v689 = vmul.f32 %v239, %v677
        %v690 = vmul.f32 %v240, %v677
        %v691 = vmul.f32 %v241, %v677
        %v692 = vmul.f32 %v242, %v677
        %v693 = vmul.f32 %v243, %v677
        %v694 = vmul.f32 %v244, %v677
        %v695 = vmul.f32 %v245, %v677
        %v696 = vmul.f32 %v246, %v677
        %v697 = vmul.f32 %v247, %v677
        %v698 = vmul.f32 %v248, %v677
        %v699 = vmul.f32 %v249, %v677
        %v700 = vmul.f32 %v250, %v677
        %v701 = vmul.f32 %v251, %v677
        %v726 = vrot.slane %v678, 2
        %v727 = vrot.slane %v679, 2
        %v728 = vsel %vm446, %v726, %v727
        %v729 = vrot.slane %v680, 2
        %v730 = vsel %vm446, %v727, %v729
        %v731 = vrot.slane %v681, 2
        %v732 = vrot.slane %v682, 2
        %v733 = vsel %vm446, %v731, %v732
        %v734 = vrot.slane %v683, 2
        %v735 = vsel %vm446, %v732, %v734
        %v736 = vrot.slane %v684, 2
        %v737 = vrot.slane %v685, 2
        %v738 = vsel %vm446, %v736, %v737
        %v739 = vrot.slane %v686, 2
        %v740 = vsel %vm446, %v737, %v739
        %v741 = vrot.slane %v687, 2
        %v742 = vrot.slane %v688, 2
        %v743 = vsel %vm446, %v741, %v742
        %v744 = vrot.slane %v689, 2
        %v745 = vsel %vm446, %v742, %v744
        %v746 = vrot.slane %v690, 2
        %v747 = vrot.slane %v691, 2
        %v748 = vsel %vm446, %v746, %v747
        %v749 = vrot.slane %v692, 2
        %v750 = vsel %vm446, %v747, %v749
        %v751 = vrot.slane %v693, 2
        %v752 = vrot.slane %v694, 2
        %v753 = vsel %vm446, %v751, %v752
        %v754 = vrot.slane %v695, 2
        %v755 = vsel %vm446, %v752, %v754
        %v756 = vrot.slane %v696, 2
        %v757 = vrot.slane %v697, 2
        %v758 = vsel %vm446, %v756, %v757
        %v759 = vrot.slane %v698, 2
        %v760 = vsel %vm446, %v757, %v759
        %v761 = vrot.slane %v699, 2
        %v762 = vrot.slane %v700, 2
        %v763 = vsel %vm446, %v761, %v762
        %v764 = vrot.slane %v701, 2
        %v765 = vsel %vm446, %v762, %v764
        %v782 = vadd.f32 %v660, %v728
        %v783 = vadd.f32 %v661, %v730
        %v784 = vadd.f32 %v662, %v733
        %v785 = vadd.f32 %v663, %v735
        %v786 = vadd.f32 %v664, %v738
        %v787 = vadd.f32 %v665, %v740
        %v788 = vadd.f32 %v666, %v743
        %v789 = vadd.f32 %v667, %v745
        %v790 = vadd.f32 %v668, %v748
        %v791 = vadd.f32 %v669, %v750
        %v792 = vadd.f32 %v670, %v753
        %v793 = vadd.f32 %v671, %v755
        %v794 = vadd.f32 %v672, %v758
        %v795 = vadd.f32 %v673, %v760
        %v796 = vadd.f32 %v674, %v763
        %v797 = vadd.f32 %v675, %v765
        %s798 = scalar_lea.vmem %s1, 8
        %v799 = vld [vmem:[%s798] sm:$0x1]
        %v800 = vperm.slane %v799, 0
        %v801 = vmul.f32 %v231, %v800
        %v802 = vmul.f32 %v232, %v800
        %v803 = vmul.f32 %v234, %v800
        %v804 = vmul.f32 %v235, %v800
        %v805 = vmul.f32 %v237, %v800
        %v806 = vmul.f32 %v238, %v800
        %v807 = vmul.f32 %v240, %v800
        %v808 = vmul.f32 %v241, %v800
        %v809 = vmul.f32 %v243, %v800
        %v810 = vmul.f32 %v244, %v800
        %v811 = vmul.f32 %v246, %v800
        %v812 = vmul.f32 %v247, %v800
        %v813 = vmul.f32 %v249, %v800
        %v814 = vmul.f32 %v250, %v800
        %v815 = vmul.f32 %v252, %v800
        %v816 = vmul.f32 %v253, %v800
        %v817 = vadd.f32 %v782, %v801
        %v818 = vadd.f32 %v783, %v802
        %v819 = vadd.f32 %v784, %v803
        %v820 = vadd.f32 %v785, %v804
        %v821 = vadd.f32 %v786, %v805
        %v822 = vadd.f32 %v787, %v806
        %v823 = vadd.f32 %v788, %v807
        %v824 = vadd.f32 %v789, %v808
        %v825 = vadd.f32 %v790, %v809
        %v826 = vadd.f32 %v791, %v810
        %v827 = vadd.f32 %v792, %v811
        %v828 = vadd.f32 %v793, %v812
        %v829 = vadd.f32 %v794, %v813
        %v830 = vadd.f32 %v795, %v814
        %v831 = vadd.f32 %v796, %v815
        %v832 = vadd.f32 %v797, %v816
        %v833 = vld [vmem:[%s798 + $0x1] sm:$0x1]
        %v834 = vperm.slane %v833, 0
        %v835 = vmul.f32 %v231, %v834
        %v836 = vmul.f32 %v232, %v834
        %v837 = vmul.f32 %v233, %v834
        %v838 = vmul.f32 %v234, %v834
        %v839 = vmul.f32 %v235, %v834
        %v840 = vmul.f32 %v236, %v834
        %v841 = vmul.f32 %v237, %v834
        %v842 = vmul.f32 %v238, %v834
        %v843 = vmul.f32 %v239, %v834
        %v844 = vmul.f32 %v240, %v834
        %v845 = vmul.f32 %v241, %v834
        %v846 = vmul.f32 %v242, %v834
        %v847 = vmul.f32 %v243, %v834
        %v848 = vmul.f32 %v244, %v834
        %v849 = vmul.f32 %v245, %v834
        %v850 = vmul.f32 %v246, %v834
        %v851 = vmul.f32 %v247, %v834
        %v852 = vmul.f32 %v248, %v834
        %v853 = vmul.f32 %v249, %v834
        %v854 = vmul.f32 %v250, %v834
        %v855 = vmul.f32 %v251, %v834
        %v856 = vmul.f32 %v252, %v834
        %v857 = vmul.f32 %v253, %v834
        %v858 = vmul.f32 %v254, %v834
        %v883 = vrot.slane %v835, 1
        %v884 = vrot.slane %v836, 1
        %v885 = vsel %vm323, %v883, %v884
        %v886 = vrot.slane %v837, 1
        %v887 = vsel %vm323, %v884, %v886
        %v888 = vrot.slane %v838, 1
        %v889 = vrot.slane %v839, 1
        %v890 = vsel %vm323, %v888, %v889
        %v891 = vrot.slane %v840, 1
        %v892 = vsel %vm323, %v889, %v891
        %v893 = vrot.slane %v841, 1
        %v894 = vrot.slane %v842, 1
        %v895 = vsel %vm323, %v893, %v894
        %v896 = vrot.slane %v843, 1
        %v897 = vsel %vm323, %v894, %v896
        %v898 = vrot.slane %v844, 1
        %v899 = vrot.slane %v845, 1
        %v900 = vsel %vm323, %v898, %v899
        %v901 = vrot.slane %v846, 1
        %v902 = vsel %vm323, %v899, %v901
        %v903 = vrot.slane %v847, 1
        %v904 = vrot.slane %v848, 1
        %v905 = vsel %vm323, %v903, %v904
        %v906 = vrot.slane %v849, 1
        %v907 = vsel %vm323, %v904, %v906
        %v908 = vrot.slane %v850, 1
        %v909 = vrot.slane %v851, 1
        %v910 = vsel %vm323, %v908, %v909
        %v911 = vrot.slane %v852, 1
        %v912 = vsel %vm323, %v909, %v911
        %v913 = vrot.slane %v853, 1
        %v914 = vrot.slane %v854, 1
        %v915 = vsel %vm323, %v913, %v914
        %v916 = vrot.slane %v855, 1
        %v917 = vsel %vm323, %v914, %v916
        %v918 = vrot.slane %v856, 1
        %v919 = vrot.slane %v857, 1
        %v920 = vsel %vm323, %v918, %v919
        %v921 = vrot.slane %v858, 1
        %v922 = vsel %vm323, %v919, %v921
        %v939 = vadd.f32 %v817, %v885
        %v940 = vadd.f32 %v818, %v887
        %v941 = vadd.f32 %v819, %v890
        %v942 = vadd.f32 %v820, %v892
        %v943 = vadd.f32 %v821, %v895
        %v944 = vadd.f32 %v822, %v897
        %v945 = vadd.f32 %v823, %v900
        %v946 = vadd.f32 %v824, %v902
        %v947 = vadd.f32 %v825, %v905
        %v948 = vadd.f32 %v826, %v907
        %v949 = vadd.f32 %v827, %v910
        %v950 = vadd.f32 %v828, %v912
        %v951 = vadd.f32 %v829, %v915
        %v952 = vadd.f32 %v830, %v917
        %v953 = vadd.f32 %v831, %v920
        %v954 = vadd.f32 %v832, %v922
        %v955 = vld [vmem:[%s798 + $0x2] sm:$0x1]
        %v956 = vperm.slane %v955, 0
        %v957 = vmul.f32 %v231, %v956
        %v958 = vmul.f32 %v232, %v956
        %v959 = vmul.f32 %v233, %v956
        %v960 = vmul.f32 %v234, %v956
        %v961 = vmul.f32 %v235, %v956
        %v962 = vmul.f32 %v236, %v956
        %v963 = vmul.f32 %v237, %v956
        %v964 = vmul.f32 %v238, %v956
        %v965 = vmul.f32 %v239, %v956
        %v966 = vmul.f32 %v240, %v956
        %v967 = vmul.f32 %v241, %v956
        %v968 = vmul.f32 %v242, %v956
        %v969 = vmul.f32 %v243, %v956
        %v970 = vmul.f32 %v244, %v956
        %v971 = vmul.f32 %v245, %v956
        %v972 = vmul.f32 %v246, %v956
        %v973 = vmul.f32 %v247, %v956
        %v974 = vmul.f32 %v248, %v956
        %v975 = vmul.f32 %v249, %v956
        %v976 = vmul.f32 %v250, %v956
        %v977 = vmul.f32 %v251, %v956
        %v978 = vmul.f32 %v252, %v956
        %v979 = vmul.f32 %v253, %v956
        %v980 = vmul.f32 %v254, %v956
        %v1005 = vrot.slane %v957, 2
        %v1006 = vrot.slane %v958, 2
        %v1007 = vsel %vm446, %v1005, %v1006
        %v1008 = vrot.slane %v959, 2
        %v1009 = vsel %vm446, %v1006, %v1008
        %v1010 = vrot.slane %v960, 2
        %v1011 = vrot.slane %v961, 2
        %v1012 = vsel %vm446, %v1010, %v1011
        %v1013 = vrot.slane %v962, 2
        %v1014 = vsel %vm446, %v1011, %v1013
        %v1015 = vrot.slane %v963, 2
        %v1016 = vrot.slane %v964, 2
        %v1017 = vsel %vm446, %v1015, %v1016
        %v1018 = vrot.slane %v965, 2
        %v1019 = vsel %vm446, %v1016, %v1018
        %v1020 = vrot.slane %v966, 2
        %v1021 = vrot.slane %v967, 2
        %v1022 = vsel %vm446, %v1020, %v1021
        %v1023 = vrot.slane %v968, 2
        %v1024 = vsel %vm446, %v1021, %v1023
        %v1025 = vrot.slane %v969, 2
        %v1026 = vrot.slane %v970, 2
        %v1027 = vsel %vm446, %v1025, %v1026
        %v1028 = vrot.slane %v971, 2
        %v1029 = vsel %vm446, %v1026, %v1028
        %v1030 = vrot.slane %v972, 2
        %v1031 = vrot.slane %v973, 2
        %v1032 = vsel %vm446, %v1030, %v1031
        %v1033 = vrot.slane %v974, 2
        %v1034 = vsel %vm446, %v1031, %v1033
        %v1035 = vrot.slane %v975, 2
        %v1036 = vrot.slane %v976, 2
        %v1037 = vsel %vm446, %v1035, %v1036
        %v1038 = vrot.slane %v977, 2
        %v1039 = vsel %vm446, %v1036, %v1038
        %v1040 = vrot.slane %v978, 2
        %v1041 = vrot.slane %v979, 2
        %v1042 = vsel %vm446, %v1040, %v1041
        %v1043 = vrot.slane %v980, 2
        %v1044 = vsel %vm446, %v1041, %v1043
        %v1061 = vadd.f32 %v939, %v1007
        %v1062 = vadd.f32 %v940, %v1009
        %v1063 = vadd.f32 %v941, %v1012
        %v1064 = vadd.f32 %v942, %v1014
        %v1065 = vadd.f32 %v943, %v1017
        %v1066 = vadd.f32 %v944, %v1019
        %v1067 = vadd.f32 %v945, %v1022
        %v1068 = vadd.f32 %v946, %v1024
        %v1069 = vadd.f32 %v947, %v1027
        %v1070 = vadd.f32 %v948, %v1029
        %v1071 = vadd.f32 %v949, %v1032
        %v1072 = vadd.f32 %v950, %v1034
        %v1073 = vadd.f32 %v951, %v1037
        %v1074 = vadd.f32 %v952, %v1039
        %v1075 = vadd.f32 %v953, %v1042
        %v1076 = vadd.f32 %v954, %v1044
        %v1077 = vpack.c.bf16 %v1061, %v1061
        %v1078 = vpack.c.bf16 %v1062, %v1062
        %v1079 = vpack.c.bf16 %v1063, %v1063
        %v1080 = vpack.c.bf16 %v1064, %v1064
        %v1081 = vpack.c.bf16 %v1065, %v1065
        %v1082 = vpack.c.bf16 %v1066, %v1066
        %v1083 = vpack.c.bf16 %v1067, %v1067
        %v1084 = vpack.c.bf16 %v1068, %v1068
        %v1085 = vpack.c.bf16 %v1069, %v1069
        %v1086 = vpack.c.bf16 %v1070, %v1070
        %v1087 = vpack.c.bf16 %v1071, %v1071
        %v1088 = vpack.c.bf16 %v1072, %v1072
        %v1089 = vpack.c.bf16 %v1073, %v1073
        %v1090 = vpack.c.bf16 %v1074, %v1074
        %v1091 = vpack.c.bf16 %v1075, %v1075
        %v1092 = vpack.c.bf16 %v1076, %v1076
        %v1093 = vld [vmem:[%s2] sm:$0xf]
        %v1094 = vld [vmem:[%s2 + $0x4] sm:$0xf]
        %v1095 = vld [vmem:[%s2 + $0x8] sm:$0xf]
        %v1096 = vld [vmem:[%s2 + $0xc] sm:$0xf]
        %v1097 = vld [vmem:[%s2 + $0x10] sm:$0xf]
        %v1098 = vld [vmem:[%s2 + $0x14] sm:$0xf]
        %v1099 = vld [vmem:[%s2 + $0x18] sm:$0xf]
        %v1100 = vld [vmem:[%s2 + $0x1c] sm:$0xf]
        %v1101 = vld [vmem:[%s2 + $0x20] sm:$0xf]
        %v1102 = vld [vmem:[%s2 + $0x24] sm:$0xf]
        %v1103 = vld [vmem:[%s2 + $0x28] sm:$0xf]
        %v1104 = vld [vmem:[%s2 + $0x2c] sm:$0xf]
        %v1105 = vld [vmem:[%s2 + $0x30] sm:$0xf]
        %v1106 = vld [vmem:[%s2 + $0x34] sm:$0xf]
        %v1107 = vld [vmem:[%s2 + $0x38] sm:$0xf]
        %v1108 = vld [vmem:[%s2 + $0x3c] sm:$0xf]
        %v1109 = vld [vmem:[%s3] sm:$0x1]
        %v1111 = vperm.slane %v1109, 0
        %v1129 = vunpack.c.l.b16 %v1077
        %v1130 = vunpack.c.l.b16 %v1078
        %v1131 = vunpack.c.l.b16 %v1079
        %v1132 = vunpack.c.l.b16 %v1080
        %v1133 = vunpack.c.l.b16 %v1081
        %v1134 = vunpack.c.l.b16 %v1082
        %v1135 = vunpack.c.l.b16 %v1083
        %v1136 = vunpack.c.l.b16 %v1084
        %v1137 = vunpack.c.l.b16 %v1085
        %v1138 = vunpack.c.l.b16 %v1086
        %v1139 = vunpack.c.l.b16 %v1087
        %v1140 = vunpack.c.l.b16 %v1088
        %v1141 = vunpack.c.l.b16 %v1089
        %v1142 = vunpack.c.l.b16 %v1090
        %v1143 = vunpack.c.l.b16 %v1091
        %v1144 = vunpack.c.l.b16 %v1092
        %v1145 = vpack.c.b16 %v1130, %v1129
        %v1146 = vpack.c.b16 %v1132, %v1131
        %v1147 = vpack.c.b16 %v1134, %v1133
        %v1148 = vpack.c.b16 %v1136, %v1135
        %v1149 = vpack.c.b16 %v1138, %v1137
        %v1150 = vpack.c.b16 %v1140, %v1139
        %v1151 = vpack.c.b16 %v1142, %v1141
        %v1152 = vpack.c.b16 %v1144, %v1143
        %v1177 = vunpack.c.l.b16 %v1093
        %v1178 = vunpack.c.l.b16 %v1094
        %v1179 = vunpack.c.l.b16 %v1095
        %v1180 = vunpack.c.l.b16 %v1096
        %v1181 = vunpack.c.l.b16 %v1097
        %v1182 = vunpack.c.l.b16 %v1098
        %v1183 = vunpack.c.l.b16 %v1099
        %v1184 = vunpack.c.l.b16 %v1100
        %v1185 = vunpack.c.l.b16 %v1101
        %v1186 = vunpack.c.l.b16 %v1102
        %v1187 = vunpack.c.l.b16 %v1103
        %v1188 = vunpack.c.l.b16 %v1104
        %v1189 = vunpack.c.l.b16 %v1105
        %v1190 = vunpack.c.l.b16 %v1106
        %v1191 = vunpack.c.l.b16 %v1107
        %v1192 = vunpack.c.l.b16 %v1108
        %v1193 = vpack.c.b16 %v1178, %v1177
        %v1194 = vpack.c.b16 %v1180, %v1179
        %v1195 = vpack.c.b16 %v1182, %v1181
        %v1196 = vpack.c.b16 %v1184, %v1183
        %v1197 = vpack.c.b16 %v1186, %v1185
        %v1198 = vpack.c.b16 %v1188, %v1187
        %v1199 = vpack.c.b16 %v1190, %v1189
        %v1200 = vpack.c.b16 %v1192, %v1191
        %1209 = vmatpush.bf16.msra.mxu0 %v1200
        %1210 = vmatpush.bf16.msra.mxu0 %v1199
        %1211 = vmatpush.bf16.msra.mxu0 %v1198
        %1212 = vmatpush.bf16.msra.mxu0 %v1197
        %1213 = vmatpush.bf16.msra.mxu0 %v1196
        %1214 = vmatpush.bf16.msra.mxu0 %v1195
        %1215 = vmatpush.bf16.msra.mxu0 %v1194
        %1216 = vmatpush.bf16.msra.mxu0 %v1193
        %1217 = vmatmul.bf16.gmra.mxu0 %v1145
        %v1218 = vpop.f32.mrf.mxu0
        %v1219 = vadd.f32 %v1111, %v1218
        %v1220 = vpop.f32.mrf.mxu0
        %v1221 = vadd.f32 %v1111, %v1220
        %1222 = vmatmul.bf16.gmra.mxu0 %v1146
        %v1223 = vpop.f32.mrf.mxu0
        %v1224 = vadd.f32 %v1111, %v1223
        %v1225 = vpop.f32.mrf.mxu0
        %v1226 = vadd.f32 %v1111, %v1225
        %1227 = vmatmul.bf16.gmra.mxu0 %v1147
        %v1228 = vpop.f32.mrf.mxu0
        %v1229 = vadd.f32 %v1111, %v1228
        %v1230 = vpop.f32.mrf.mxu0
        %v1231 = vadd.f32 %v1111, %v1230
        %1232 = vmatmul.bf16.gmra.mxu0 %v1148
        %v1233 = vpop.f32.mrf.mxu0
        %v1234 = vadd.f32 %v1111, %v1233
        %v1235 = vpop.f32.mrf.mxu0
        %v1236 = vadd.f32 %v1111, %v1235
        %1237 = vmatmul.bf16.gmra.mxu0 %v1149
        %v1238 = vpop.f32.mrf.mxu0
        %v1239 = vadd.f32 %v1111, %v1238
        %v1240 = vpop.f32.mrf.mxu0
        %v1241 = vadd.f32 %v1111, %v1240
        %1242 = vmatmul.bf16.gmra.mxu0 %v1150
        %v1243 = vpop.f32.mrf.mxu0
        %v1244 = vadd.f32 %v1111, %v1243
        %v1245 = vpop.f32.mrf.mxu0
        %v1246 = vadd.f32 %v1111, %v1245
        %1247 = vmatmul.bf16.gmra.mxu0 %v1151
        %v1248 = vpop.f32.mrf.mxu0
        %v1249 = vadd.f32 %v1111, %v1248
        %v1250 = vpop.f32.mrf.mxu0
        %v1251 = vadd.f32 %v1111, %v1250
        %1252 = vmatmul.bf16.gmra.mxu0 %v1152
        %v1253 = vpop.f32.mrf.mxu0
        %v1254 = vadd.f32 %v1111, %v1253
        %v1255 = vpop.f32.mrf.mxu0
        %v1256 = vadd.f32 %v1111, %v1255
        %1257 = vdwg.mxu0
        %1258 = vst [vmem:[%s214] sm:$0xff] %v1219
        %1259 = vst [vmem:[%s214 + $0x8] sm:$0xff] %v1221
        %1260 = vst [vmem:[%s214 + $0x10] sm:$0xff] %v1224
        %1261 = vst [vmem:[%s214 + $0x18] sm:$0xff] %v1226
        %1262 = vst [vmem:[%s214 + $0x20] sm:$0xff] %v1229
        %1263 = vst [vmem:[%s214 + $0x28] sm:$0xff] %v1231
        %1264 = vst [vmem:[%s214 + $0x30] sm:$0xff] %v1234
        %1265 = vst [vmem:[%s214 + $0x38] sm:$0xff] %v1236
        %1266 = vst [vmem:[%s214 + $0x40] sm:$0xff] %v1239
        %1267 = vst [vmem:[%s214 + $0x48] sm:$0xff] %v1241
        %1268 = vst [vmem:[%s214 + $0x50] sm:$0xff] %v1244
        %1269 = vst [vmem:[%s214 + $0x58] sm:$0xff] %v1246
        %1270 = vst [vmem:[%s214 + $0x60] sm:$0xff] %v1249
        %1271 = vst [vmem:[%s214 + $0x68] sm:$0xff] %v1251
        %1272 = vst [vmem:[%s214 + $0x70] sm:$0xff] %v1254
        %1273 = vst [vmem:[%s214 + $0x78] sm:$0xff] %v1256
        %s1274 = sand.u32 %s131, 1
        %s1275 = scalar_lea.sflag [#allocation3], %s1274
        %s1276 = sand.u32 %s131, 1
        %s1277 = smul.addr %s1276, 128
        %s1278 = scalar_lea.vmem [#allocation2], %s1277
        // Predicated region
        $region37: #{tpu_custom_call.1} parent=35 // pred_check
          %p1279 = pneg %p141
        $region38: #{tpu_custom_call.1} parent=35 // pred_check_branch
          %1281 = sbr.rel (%p1279) target = $region40
        $region39: #{tpu_custom_call.1} parent=35 // pred_region
          %s1282 = smul.u32 8, %s23
          %1284 = vsyncadd %s1275, 0
          %s1285 = smul.addr %s1282, 2
          %s1286 = smul.addr %s22, 32
          %s1287 = sadd.s32 %s1285, %s1286
          %s1288 = smul.addr %s1287, 8
          %s1289 = scalar_lea.hbm %s4, %s1288
          %s1290 = sshll.u32 %s1278, 4
          %s1291 = int_to_ptr.vmem [resolvable:$true] %s1290
          %s1292 = sshll.u32 %s1289, 4
          %s1293 = int_to_ptr.hbm [resolvable:$true] %s1292
          %1298 = dma.vmem_to_hbm [thread:$0]  %s1291, 2048, %s1293, %s1275, 128, 128, 8
        $region40: #{tpu_custom_call.1} parent=35 // pred_fallthru
          _
      $region36: #{tpu_custom_call.1} parent=5 // pred_fallthru
        _
      %p1299 = scmp.le.s32.totalorder 2, %s13
      // Predicated region
      $region41: #{tpu_custom_call.1} parent=5 // pred_check
        %p1300 = pneg %p1299
      $region42: #{tpu_custom_call.1} parent=5 // pred_check_branch
        %1302 = sbr.rel (%p1300) target = $region44
      $region43: #{tpu_custom_call.1} parent=5 // pred_region
        %s1303 = ssub.s32 %s13, 2
        // Predicated region
        $region45: #{tpu_custom_call.1} parent=43 // pred_check
          %p1304 = pneg %p147
        $region46: #{tpu_custom_call.1} parent=43 // pred_check_branch
          %1306 = sbr.rel (%p1304) target = $region48
        $region47: #{tpu_custom_call.1} parent=43 // pred_region
          %s1307 = sand.u32 %s132, 1
          %s1308 = scalar_lea.sflag [#allocation3], %s1307
          %s1309 = sand.u32 %s132, 1
          %s1310 = smul.addr %s1309, 128
          %s1311 = scalar_lea.vmem [#allocation2], %s1310
          %1313 = dma.done %s1308, 2048
        $region48: #{tpu_custom_call.1} parent=43 // pred_fallthru
          _
      $region44: #{tpu_custom_call.1} parent=5 // pred_fallthru
        _
    $region6: #{tpu_custom_call.1} parent=1 // loop_footer
      %s17 = sadd.s32 1, %s13
    $region7: #{tpu_custom_call.1} parent=1 // loop_footer_branch
      %12 = sbr.rel target = $region3
    $region8: #{tpu_custom_call.1} parent=1 // loop_exit
      _
    %1314 = vsyncpa [#allocation3], 1
    %s1315 = scalar_lea.sflag [#allocation3], 1
    %1316 = vsyncpa %s1315, 1

</llo_original>
